<compile_context>
chip_gen: v5e
topology: v5e:2x2
jax: 0.10.0
libtpu: 0.0.40
codegen_flags: <defaults>
</compile_context>

<pallas_src>
import jax
import jax.numpy as jnp
import numpy as np
from jax import lax
from jax.experimental import pallas as pl
from jax.experimental.pallas import tpu as pltpu


def _sobel_kernel(x_ref, o_ref):
    # x_ref: (bb, 3, H, W)   o_ref: (bb, 2, H-2, W-2)
    H = x_ref.shape[2]
    W = x_ref.shape[3]

    # grayscale 1x1 conv: per-pixel mean of the 3 channels (bias = 0),
    # computed in f32 regardless of the HBM storage dtype.
    g0 = x_ref[:, 0, :, :].astype(jnp.float32)
    g1 = x_ref[:, 1, :, :].astype(jnp.float32)
    g2 = x_ref[:, 2, :, :].astype(jnp.float32)
    gray = (g0 + g1 + g2) * jnp.float32(1.0 / 3.0)          # (bb, H, W)

    top = gray[:, 0:H - 2, :]                               # g[i]
    mid = gray[:, 1:H - 1, :]                               # g[i+1]
    bot = gray[:, 2:H, :]                                   # g[i+2]

    # --- Gx chain first (keeps peak live temporaries low) ---
    # vertical pass [1,2,1]^T, then horizontal [1,0,-1]
    a = top + 2.0 * mid + bot                               # (bb, H-2, W)
    gx = a[:, :, 0:W - 2] - a[:, :, 2:W]                    # (bb, H-2, W-2)
    o_ref[:, 0, :, :] = gx.astype(o_ref.dtype)

    # --- Gy chain ---
    # vertical pass [1,0,-1]^T, then horizontal [1,2,1]
    d = top - bot                                           # (bb, H-2, W)
    gy = d[:, :, 0:W - 2] + 2.0 * d[:, :, 1:W - 1] + d[:, :, 2:W]
    o_ref[:, 1, :, :] = gy.astype(o_ref.dtype)


def net_forward(x, *, vmem_block_budget_bytes=12 * 1024 * 1024):
    """Forward pass of Net: sobel(grayscale(x)).  x: (B, 3, H, W)."""
    B, C, H, W = x.shape
    assert C == 3
    if H < 3 or W < 3:
        raise ValueError("Net(sobel=True) needs H >= 3 and W >= 3 (valid 3x3 conv).")

    Ho, Wo = H - 2, W - 2
    out_dtype = x.dtype
    itemsize = jnp.dtype(x.dtype).itemsize

    # --- VMEM footprint per image (VMEM stores values in (8,128) reg tiles) ---
    def _pad8(n):
        return ((n + 7) // 8) * 8

    def _pad128(n):
        return ((n + 127) // 128) * 128

    hp, wp = _pad8(H), _pad128(W)
    hop, wop = _pad8(Ho), _pad128(Wo)
    in_bytes = C * hp * wp * itemsize
    out_bytes = 2 * hop * wop * itemsize
    tmp_bytes = 6 * hp * wp * 4            # gray / a / d / gx / gy / slice copies (f32)
    per_img = 2 * (in_bytes + out_bytes) + tmp_bytes   # 2x = double-buffered I/O

    bb = max(1, min(B, vmem_block_budget_bytes // per_img))
    # keep >= 4 grid steps when B allows (v7x megacore sharding + DMA overlap)
    bb = min(bb, max(1, pl.cdiv(B, 4)))
    grid = (pl.cdiv(B, bb),)               # ragged tail: OOB blocks are masked

    cost = pl.CostEstimate(
        flops=int(11 * B * Ho * Wo),
        transcendentals=0,
        bytes_accessed=int(B * (C * H * W + 2 * Ho * Wo) * itemsize),
    )

    compiler_kwargs = dict(dimension_semantics=("parallel",))
    step_bytes = bb * per_img
    if step_bytes > (14 << 20):
        # TODO(synk): switch to row-strip tiling with a 2-row halo for huge images.
        compiler_kwargs["vmem_limit_bytes"] = int(min(step_bytes + (2 << 20), 40 << 20))

    out = pl.pallas_call(
        _sobel_kernel,
        out_shape=jax.ShapeDtypeStruct((B, 2, Ho, Wo), out_dtype),
        grid=grid,
        # last two block dims equal the full array dims -> no (8,128) padding
        # in HBM, only the real bytes are DMA'd.
        in_specs=[pl.BlockSpec((bb, C, H, W), lambda b: (b, 0, 0, 0))],
        out_specs=pl.BlockSpec((bb, 2, Ho, Wo), lambda b: (b, 0, 0, 0)),
        compiler_params=pltpu.CompilerParams(**compiler_kwargs),
        cost_estimate=cost,
    )(x)
    return out


def _reference(x):
    """Pure-JAX reference using lax convolutions (matches PyTorch semantics)."""
    x = x.astype(jnp.float32)
    w_gray = jnp.full((1, 3, 1, 1), 1.0 / 3.0, jnp.float32)
    gray = lax.conv_general_dilated(
        x, w_gray, window_strides=(1, 1), padding="VALID",
        dimension_numbers=("NCHW", "OIHW", "NCHW"))
    gx = jnp.array([[1, 0, -1], [2, 0, -2], [1, 0, -1]], jnp.float32)
    gy = jnp.array([[1, 2, 1], [0, 0, 0], [-1, -2, -1]], jnp.float32)
    w_sobel = jnp.stack([gx, gy], axis=0)[:, None, :, :]   # (2,1,3,3)
    return lax.conv_general_dilated(
        gray, w_sobel, window_strides=(1, 1), padding="VALID",
        dimension_numbers=("NCHW", "OIHW", "NCHW"))


if __name__ == "__main__":
    key = jax.random.PRNGKey(0)
    B, C, H, W = 2, 3, 16, 16
    x = jax.random.normal(key, (B, C, H, W), dtype=jnp.float32)

    out = jax.block_until_ready(net_forward(x))

    ref = jax.block_until_ready(_reference(x))
    np.testing.assert_allclose(np.asarray(out), np.asarray(ref),
                               rtol=1e-5, atol=1e-5)
    assert out.shape == (B, 2, H - 2, W - 2)
    print("KERNEL_OK")
</pallas_src>

<mosaic_0001>
module attributes {stable_mosaic.version = 11 : i64} {
  func.func @_sobel_kernel(%arg0: i32, %arg1: memref<1x3x16x16xf32, #tpu.memory_space<vmem>>, %arg2: memref<1x2x14x14xf32, #tpu.memory_space<vmem>>) attributes {dimension_semantics = [#tpu.dimension_semantics<parallel>], iteration_bounds = array<i64: 2>, scalar_prefetch = 0 : i64, scratch_operands = 0 : i64, tpu.core_type = #tpu.core_type<tc>, window_params = [{transform_indices = @transform_0, window_bounds = array<i64: 1, 3, 16, 16>}, {transform_indices = @transform_1, window_bounds = array<i64: 1, 2, 14, 14>}]} {
    %c0 = arith.constant 0 : index
    %c0_0 = arith.constant 0 : index
    %c0_1 = arith.constant 0 : index
    %c0_2 = arith.constant 0 : index
    %0 = vector.load %arg1[%c0, %c0_0, %c0_1, %c0_2] : memref<1x3x16x16xf32, #tpu.memory_space<vmem>>, vector<1x1x16x16xf32>
    %1 = vector.shape_cast %0 : vector<1x1x16x16xf32> to vector<1x16x16xf32>
    %c0_3 = arith.constant 0 : index
    %c1 = arith.constant 1 : index
    %c0_4 = arith.constant 0 : index
    %c0_5 = arith.constant 0 : index
    %2 = vector.load %arg1[%c0_3, %c1, %c0_4, %c0_5] : memref<1x3x16x16xf32, #tpu.memory_space<vmem>>, vector<1x1x16x16xf32>
    %3 = vector.shape_cast %2 : vector<1x1x16x16xf32> to vector<1x16x16xf32>
    %c0_6 = arith.constant 0 : index
    %c2 = arith.constant 2 : index
    %c0_7 = arith.constant 0 : index
    %c0_8 = arith.constant 0 : index
    %4 = vector.load %arg1[%c0_6, %c2, %c0_7, %c0_8] : memref<1x3x16x16xf32, #tpu.memory_space<vmem>>, vector<1x1x16x16xf32>
    %5 = vector.shape_cast %4 : vector<1x1x16x16xf32> to vector<1x16x16xf32>
    %6 = arith.addf %1, %3 : vector<1x16x16xf32>
    %7 = arith.addf %6, %5 : vector<1x16x16xf32>
    %cst = arith.constant 0.333333343 : f32
    %8 = vector.broadcast %cst : f32 to vector<1x16x16xf32>
    %9 = arith.mulf %7, %8 : vector<1x16x16xf32>
    %10 = vector.extract_strided_slice %9 {offsets = [0, 0, 0], sizes = [1, 14, 16], strides = [1, 1, 1]} : vector<1x16x16xf32> to vector<1x14x16xf32>
    %11 = vector.extract_strided_slice %9 {offsets = [0, 1, 0], sizes = [1, 14, 16], strides = [1, 1, 1]} : vector<1x16x16xf32> to vector<1x14x16xf32>
    %12 = vector.extract_strided_slice %9 {offsets = [0, 2, 0], sizes = [1, 14, 16], strides = [1, 1, 1]} : vector<1x16x16xf32> to vector<1x14x16xf32>
    %cst_9 = arith.constant 2.000000e+00 : f32
    %13 = vector.broadcast %cst_9 : f32 to vector<1x14x16xf32>
    %14 = arith.mulf %13, %11 : vector<1x14x16xf32>
    %15 = arith.addf %10, %14 : vector<1x14x16xf32>
    %16 = arith.addf %15, %12 : vector<1x14x16xf32>
    %17 = vector.extract_strided_slice %16 {offsets = [0, 0, 0], sizes = [1, 14, 14], strides = [1, 1, 1]} : vector<1x14x16xf32> to vector<1x14x14xf32>
    %18 = vector.extract_strided_slice %16 {offsets = [0, 0, 2], sizes = [1, 14, 14], strides = [1, 1, 1]} : vector<1x14x16xf32> to vector<1x14x14xf32>
    %19 = arith.subf %17, %18 : vector<1x14x14xf32>
    %c0_10 = arith.constant 0 : index
    %c0_11 = arith.constant 0 : index
    %c0_12 = arith.constant 0 : index
    %c0_13 = arith.constant 0 : index
    %20 = vector.load %arg2[%c0_10, %c0_11, %c0_12, %c0_13] : memref<1x2x14x14xf32, #tpu.memory_space<vmem>>, vector<1x1x14x14xf32>
    %21 = vector.shape_cast %20 : vector<1x1x14x14xf32> to vector<1x14x14xf32>
    %22 = vector.shape_cast %19 : vector<1x14x14xf32> to vector<1x1x14x14xf32>
    tpu.vector_store %arg2[%c0_10, %c0_11, %c0_12, %c0_13], %22 {strides = array<i32>} : memref<1x2x14x14xf32, #tpu.memory_space<vmem>>, vector<1x1x14x14xf32>,
    %23 = arith.subf %10, %12 : vector<1x14x16xf32>
    %24 = vector.extract_strided_slice %23 {offsets = [0, 0, 0], sizes = [1, 14, 14], strides = [1, 1, 1]} : vector<1x14x16xf32> to vector<1x14x14xf32>
    %25 = vector.extract_strided_slice %23 {offsets = [0, 0, 1], sizes = [1, 14, 14], strides = [1, 1, 1]} : vector<1x14x16xf32> to vector<1x14x14xf32>
    %cst_14 = arith.constant 2.000000e+00 : f32
    %26 = vector.broadcast %cst_14 : f32 to vector<1x14x14xf32>
    %27 = arith.mulf %26, %25 : vector<1x14x14xf32>
    %28 = arith.addf %24, %27 : vector<1x14x14xf32>
    %29 = vector.extract_strided_slice %23 {offsets = [0, 0, 2], sizes = [1, 14, 14], strides = [1, 1, 1]} : vector<1x14x16xf32> to vector<1x14x14xf32>
    %30 = arith.addf %28, %29 : vector<1x14x14xf32>
    %c0_15 = arith.constant 0 : index
    %c1_16 = arith.constant 1 : index
    %c0_17 = arith.constant 0 : index
    %c0_18 = arith.constant 0 : index
    %31 = vector.load %arg2[%c0_15, %c1_16, %c0_17, %c0_18] : memref<1x2x14x14xf32, #tpu.memory_space<vmem>>, vector<1x1x14x14xf32>
    %32 = vector.shape_cast %31 : vector<1x1x14x14xf32> to vector<1x14x14xf32>
    %33 = vector.shape_cast %30 : vector<1x14x14xf32> to vector<1x1x14x14xf32>
    tpu.vector_store %arg2[%c0_15, %c1_16, %c0_17, %c0_18], %33 {strides = array<i32>} : memref<1x2x14x14xf32, #tpu.memory_space<vmem>>, vector<1x1x14x14xf32>,
    return
  }
  func.func @transform_0(%arg0: i32) -> (i32, i32, i32, i32) {
    %c0_i32 = arith.constant 0 : i32
    %c0_i32_0 = arith.constant 0 : i32
    %c0_i32_1 = arith.constant 0 : i32
    %c0_i32_2 = arith.constant 0 : i32
    return %arg0, %c0_i32, %c0_i32_0, %c0_i32_1 : i32, i32, i32, i32
  }
  func.func @transform_1(%arg0: i32) -> (i32, i32, i32, i32) {
    %c0_i32 = arith.constant 0 : i32
    %c0_i32_0 = arith.constant 0 : i32
    %c0_i32_1 = arith.constant 0 : i32
    %c0_i32_2 = arith.constant 0 : i32
    return %arg0, %c0_i32, %c0_i32_0, %c0_i32_1 : i32, i32, i32, i32
  }
}

</mosaic_0001>

<llo_original>
// kernel: tpu_custom_call.1
$region0: #{tpu_custom_call.1}
  #allocation0 [shape = 'u32[]', space=smem, size = 0x4, offset = 0x4, fixed_abs, tag = 'smem constant byte address 0x4 - core index']
  #allocation1 [shape = 'u32[72,128]{1,0:T(1,128)}', space=vmem, size = 0x9000, scoped, tag = 'internal scratch']
  %s0 = inlined_call_operand.hbm [shape: f32[2,3,16,16], index: 0, kind: input, shape index: {}]
  %s1 = inlined_call_operand.vmem [shape: f32[2,2,14,14], index: 1, kind: output, shape index: {}]
  %s2 = sld [smem:[#allocation0]]
  $region41: #{tpu_custom_call.1} parent=0
    _
  %s4 = ssub.s32 1, %s2
  %s5 = scalar_select 0, %s4, %s2
  $region1: #{tpu_custom_call.1} parent=0
    #allocation2 [shape = 'u8[49152]{0}', space=vmem, size = 0xc000, scoped, tag = 'input window, operand 0']
    #allocation3 [shape = 's32[2]{0}', space=sflag, size = 0x8, scoped, tag = 'scoped memory for tpu_custom_call.1']
    %6 = vsyncpa [#allocation3], 0
    %s7 = scalar_lea.sflag [#allocation3], 1
    %8 = vsyncpa %s7, 0
    loop: start=0, step=1, limit=4
    $region2: #{tpu_custom_call.1} parent=1 // loop_pre_header
      _
    $region3: #{tpu_custom_call.1} parent=1 // loop_header
      %s10 = sphi 0, %s14
      %p11 = scmp.ge.s32.totalorder %s10, 4
      %s20 = sphi 0, %s22
      %s23 = sphi 0, %s20
      %s24 = sphi 0, %s23
      %s40 = sphi 0, %s24
      %s46 = sphi 0, %s48
      %s49 = sphi 0, %s46
      %s50 = sphi 0, %s49
      %s66 = sphi 0, %s50
    $region4: #{tpu_custom_call.1} parent=1 // loop_header_branch
      %13 = sbr.rel (%p11) target = $region8
    $region5: #{tpu_custom_call.1} parent=1 // loop_body
      %s15 = ssub.s32 %s10, 1
      %s16 = ssub.s32 %s10, 2
      %s17 = sadd.s32 %s10, 1
      %s18 = ssub.s32 %s10, %s17
      %p19 = scmp.eq.s32.totalorder %s18, 0
      %s21 = sadd.s32 %s20, 1
      %s22 = scalar_select %p19, %s20, %s21
      %p25 = pneg %p19
      %p26 = scmp.eq.s32.totalorder %s10, 1
      %p27 = por %p25, %p26
      %p28 = scmp.ne.s32.totalorder %s20, %s23
      %p29 = scmp.eq.s32.totalorder %s10, 0
      %p30 = por %p28, %p29
      %p31 = scmp.ne.s32.totalorder %s20, %s23
      %p32 = scmp.eq.s32.totalorder %s15, 1
      %p33 = por %p31, %p32
      %p34 = scmp.ne.s32.totalorder %s23, %s24
      %p35 = scmp.eq.s32.totalorder %s15, 0
      %p36 = por %p34, %p35
      %p37 = scmp.ne.s32.totalorder %s23, %s24
      %p38 = scmp.eq.s32.totalorder %s16, 1
      %p39 = por %p37, %p38
      %p41 = scmp.ne.s32.totalorder %s24, %s40
      %p42 = scmp.eq.s32.totalorder %s16, 0
      %p43 = por %p41, %p42
      %s44 = ssub.s32 %s10, %s17
      %p45 = scmp.eq.s32.totalorder %s44, 0
      %s47 = sadd.s32 %s46, 1
      %s48 = scalar_select %p45, %s46, %s47
      %p51 = pneg %p45
      %p52 = scmp.eq.s32.totalorder %s10, 1
      %p53 = por %p51, %p52
      %p54 = scmp.ne.s32.totalorder %s46, %s49
      %p55 = scmp.eq.s32.totalorder %s10, 0
      %p56 = por %p54, %p55
      %p57 = scmp.ne.s32.totalorder %s46, %s49
      %p58 = scmp.eq.s32.totalorder %s15, 1
      %p59 = por %p57, %p58
      %p60 = scmp.ne.s32.totalorder %s49, %s50
      %p61 = scmp.eq.s32.totalorder %s15, 0
      %p62 = por %p60, %p61
      %p63 = scmp.ne.s32.totalorder %s49, %s50
      %p64 = scmp.eq.s32.totalorder %s16, 1
      %p65 = por %p63, %p64
      %p67 = scmp.ne.s32.totalorder %s50, %s66
      %p68 = scmp.eq.s32.totalorder %s16, 0
      %p69 = por %p67, %p68
      %p70 = scmp.le.s32.totalorder 1, %s10
      %p71 = scmp.lt.s32.totalorder %s10, 3
      %p72 = pnand %p70, %p71
      %p73 = pneg %p72
      // Predicated region
      $region9: #{tpu_custom_call.1} parent=5 // pred_check
        _
      $region10: #{tpu_custom_call.1} parent=5 // pred_check_branch
        %75 = sbr.rel (%p72) target = $region12
      $region11: #{tpu_custom_call.1} parent=5 // pred_region
        %s76 = ssub.s32 %s10, 1
      $region12: #{tpu_custom_call.1} parent=5 // pred_fallthru
        _
      %p77 = scmp.lt.s32.totalorder %s10, 2
      // Predicated region
      $region13: #{tpu_custom_call.1} parent=5 // pred_check
        %p78 = pneg %p77
      $region14: #{tpu_custom_call.1} parent=5 // pred_check_branch
        %80 = sbr.rel (%p78) target = $region16
      $region15: #{tpu_custom_call.1} parent=5 // pred_region
        // Predicated region
        $region17: #{tpu_custom_call.1} parent=15 // pred_check
          %p81 = pneg %p30
        $region18: #{tpu_custom_call.1} parent=15 // pred_check_branch
          %83 = sbr.rel (%p81) target = $region20
        $region19: #{tpu_custom_call.1} parent=15 // pred_region
          %s84 = sand.u32 %s20, 1
          %s85 = scalar_lea.sflag [#allocation3], %s84
          %s86 = sand.u32 %s20, 1
          %s87 = smul.addr %s86, 48
          %s88 = scalar_lea.vmem [#allocation2], %s87
          %90 = vsyncadd %s85, 0
          %s91 = smul.addr %s10, 6
          %s92 = smul.addr %s91, 8
          %s93 = scalar_lea.hbm %s0, %s92
          %s94 = sshll.u32 %s93, 4
          %s95 = int_to_ptr.hbm [resolvable:$true] %s94
          %s96 = sshll.u32 %s88, 4
          %s97 = int_to_ptr.vmem [resolvable:$true] %s96
          %102 = dma.hbm_to_vmem [thread:$0]  %s95, 768, %s97, %s85, 128, 128, 8
        $region20: #{tpu_custom_call.1} parent=15 // pred_fallthru
          _
      $region16: #{tpu_custom_call.1} parent=5 // pred_fallthru
        _
      %p103 = scmp.le.s32.totalorder 1, %s10
      %p104 = scmp.lt.s32.totalorder %s10, 3
      %p105 = pnand %p103, %p104
      %p106 = pneg %p105
      // Predicated region
      $region21: #{tpu_custom_call.1} parent=5 // pred_check
        _
      $region22: #{tpu_custom_call.1} parent=5 // pred_check_branch
        %108 = sbr.rel (%p105) target = $region24
      $region23: #{tpu_custom_call.1} parent=5 // pred_region
        %s109 = ssub.s32 %s10, 1
        %s110 = sand.u32 %s23, 1
        %s111 = scalar_lea.sflag [#allocation3], %s110
        %s112 = sand.u32 %s23, 1
        %s113 = smul.addr %s112, 48
        %s114 = scalar_lea.vmem [#allocation2], %s113
        // Predicated region
        $region25: #{tpu_custom_call.1} parent=23 // pred_check
          %p115 = pneg %p36
        $region26: #{tpu_custom_call.1} parent=23 // pred_check_branch
          %117 = sbr.rel (%p115) target = $region28
        $region27: #{tpu_custom_call.1} parent=23 // pred_region
          %119 = dma.done %s111, 768
        $region28: #{tpu_custom_call.1} parent=23 // pred_fallthru
          _
        %s120 = sand.u32 %s23, 1
        %s121 = scalar_lea.sflag [#allocation3], %s120
        %s122 = sand.u32 %s23, 1
        %s123 = smul.addr %s122, 48
        %s124 = scalar_lea.vmem [#allocation2], %s123
        %p125 = pneg %p36
        %p126 = pneg %p33
        %p127 = pneg %p62
        %p128 = pneg %p59
        %p129 = scmp.lt.s32.totalorder %s15, 1
        %s130 = scalar_select %p129, %s15, 1
        %s131 = smul.addr %s130, 4
        %s132 = smul.addr %s131, 8
        %s133 = scalar_lea.vmem %s1, %s132
        %p134 = scmp.lt.s32.totalorder %s15, 1
        %s135 = scalar_select %p134, %s15, 1
        %s136 = smul.addr %s135, 4
        %s137 = smul.addr %s136, 8
        %s138 = scalar_lea.vmem %s1, %s137
        %v139 = vld [vmem:[%s114] sm:$0xff]
        %v140 = vld [vmem:[%s114 + $0x8] sm:$0xff]
        %s141 = scalar_lea.vmem %s114, 16 [#allocation2]
        %v142 = vld [vmem:[%s141] sm:$0xff]
        %v143 = vld [vmem:[%s141 + $0x8] sm:$0xff]
        %s144 = scalar_lea.vmem %s114, 32 [#allocation2]
        %v145 = vld [vmem:[%s144] sm:$0xff]
        %v146 = vld [vmem:[%s144 + $0x8] sm:$0xff]
        %v147 = vadd.f32 %v139, %v142
        %v148 = vadd.f32 %v140, %v143
        %v149 = vadd.f32 %v147, %v145
        %v150 = vadd.f32 %v148, %v146
        %v151 = vmul.f32 %v149, 0.33333334
        %v152 = vmul.f32 %v150, 0.33333334
        %v153 = vmul.f32 %v151, 2.0
        %v154 = vmul.f32 %v152, 2.0
        %vm157 = vcmask 1046528
        %v158 = vrot.slane %v153, 1
        %v159 = vrot.slane %v154, 1
        %v160 = vsel %vm157, %v158, %v159
        %v163 = vadd.f32 %v151, %v160
        %v164 = vadd.f32 %v152, %v159
        %vm167 = vcmask 1045504
        %v168 = vrot.slane %v151, 2
        %v169 = vrot.slane %v152, 2
        %v170 = vsel %vm167, %v168, %v169
        %v173 = vadd.f32 %v163, %v170
        %v174 = vadd.f32 %v164, %v169
        %177 = vrot.lane.b32.xlu0 %v173, 126
        %v178 = vpop.permute.xlu0 %177
        %179 = vrot.lane.b32.xlu0 %v174, 126
        %v180 = vpop.permute.xlu0 %179
        %v183 = vsub.f32 %v173, %v178
        %v184 = vsub.f32 %v174, %v180
        %vm185 = vcmask 113664
        %186 = vst.msk [vmem:[%s138] sm:$0xff] %vm185, %v183
        %vm187 = vcmask 111616
        %188 = vst.msk [vmem:[%s138 + $0x8] sm:$0x3f] %vm187, %v184
        %v189 = vsub.f32 %v151, %v170
        %v190 = vsub.f32 %v152, %v169
        %v191 = vmul.f32 %v189, 2.0
        %v192 = vmul.f32 %v190, 2.0
        %195 = vrot.lane.b32.xlu0 %v191, 127
        %v196 = vpop.permute.xlu0 %195
        %197 = vrot.lane.b32.xlu0 %v192, 127
        %v198 = vpop.permute.xlu0 %197
        %v201 = vadd.f32 %v189, %v196
        %v202 = vadd.f32 %v190, %v198
        %205 = vrot.lane.b32.xlu0 %v189, 126
        %v206 = vpop.permute.xlu0 %205
        %207 = vrot.lane.b32.xlu0 %v190, 126
        %v208 = vpop.permute.xlu0 %207
        %v211 = vadd.f32 %v201, %v206
        %v212 = vadd.f32 %v202, %v208
        %s213 = scalar_lea.vmem %s138, 16
        %214 = vst.msk [vmem:[%s213] sm:$0xff] %vm185, %v211
        %215 = vst.msk [vmem:[%s213 + $0x8] sm:$0x3f] %vm187, %v212
        %p216 = scmp.lt.s32.totalorder %s15, 1
        %s217 = scalar_select %p216, %s15, 1
        %s218 = smul.addr %s217, 4
        %s219 = smul.addr %s218, 8
        %s220 = scalar_lea.vmem %s1, %s219
        // Predicated region
        $region29: #{tpu_custom_call.1} parent=23 // pred_check
          %p221 = pneg %p59
        $region30: #{tpu_custom_call.1} parent=23 // pred_check_branch
          %223 = sbr.rel (%p221) target = $region32
        $region31: #{tpu_custom_call.1} parent=23 // pred_region
          _
        $region32: #{tpu_custom_call.1} parent=23 // pred_fallthru
          _
      $region24: #{tpu_custom_call.1} parent=5 // pred_fallthru
        _
      %p224 = scmp.le.s32.totalorder 2, %s10
      // Predicated region
      $region33: #{tpu_custom_call.1} parent=5 // pred_check
        %p225 = pneg %p224
      $region34: #{tpu_custom_call.1} parent=5 // pred_check_branch
        %227 = sbr.rel (%p225) target = $region36
      $region35: #{tpu_custom_call.1} parent=5 // pred_region
        %s228 = ssub.s32 %s10, 2
        // Predicated region
        $region37: #{tpu_custom_call.1} parent=35 // pred_check
          %p229 = pneg %p65
        $region38: #{tpu_custom_call.1} parent=35 // pred_check_branch
          %231 = sbr.rel (%p229) target = $region40
        $region39: #{tpu_custom_call.1} parent=35 // pred_region
          %p232 = scmp.lt.s32.totalorder %s16, 1
          %s233 = scalar_select %p232, %s16, 1
          %s234 = smul.addr %s233, 4
          %s235 = smul.addr %s234, 8
          %s236 = scalar_lea.vmem %s1, %s235
        $region40: #{tpu_custom_call.1} parent=35 // pred_fallthru
          _
      $region36: #{tpu_custom_call.1} parent=5 // pred_fallthru
        _
    $region6: #{tpu_custom_call.1} parent=1 // loop_footer
      %s14 = sadd.s32 1, %s10
    $region7: #{tpu_custom_call.1} parent=1 // loop_footer_branch
      %9 = sbr.rel target = $region3
    $region8: #{tpu_custom_call.1} parent=1 // loop_exit
      _
    %237 = vsyncpa [#allocation3], 1
    %s238 = scalar_lea.sflag [#allocation3], 1
    %239 = vsyncpa %s238, 1

</llo_original>
